<compile_context>
chip_gen: v5e
topology: v5e:2x2
jax: 0.10.0
libtpu: 0.0.40
codegen_flags: <defaults>
</compile_context>

<pallas_src>
import functools

import jax
import jax.numpy as jnp
from jax.experimental import pallas as pl
from jax.experimental.pallas import tpu as pltpu

BN_EPS = 1e-5
_VMEM_LIMIT = 48 * 1024 * 1024   # fits v7x's 64 MiB physical VMEM with headroom


def _round_up(x, m):
    return (x + m - 1) // m * m


def bn_stats_kernel(x_ref, w1_ref, b1p_ref, stats_ref, *, tm, m_valid, needs_mask):
    """Pass 1: accumulate per-column sum / sum-of-squares of the layer-1 output.

    x_ref:     (TM, Cin)      bf16 token tile
    w1_ref:    (Cin, 2*Cout)  bf16, [tap0 | tap1] columns of ConvTranspose1d #1
    b1p_ref:   (1, 2*Cout)    f32, bias duplicated per tap
    stats_ref: (2, 2*Cout)    f32 accumulator: row0 = sum, row1 = sum of squares
    """
    i = pl.program_id(0)

    @pl.when(i == 0)
    def _init():
        stats_ref[...] = jnp.zeros_like(stats_ref)

    # Fused both-tap layer-1 matmul (bf16 operands, f32 accumulation).
    y = jnp.dot(x_ref[...], w1_ref[...],
                preferred_element_type=jnp.float32) + b1p_ref[...]

    if needs_mask:  # static flag: only emitted when the wrapper zero-padded tokens
        row = i * tm + jax.lax.broadcasted_iota(jnp.int32, y.shape, 0)
        y = jnp.where(row < m_valid, y, 0.0)

    s = jnp.sum(y, axis=0, keepdims=True)
    sq = jnp.sum(y * y, axis=0, keepdims=True)
    stats_ref[...] += jnp.concatenate([s, sq], axis=0)


def decoder_apply_kernel(x_ref, w1_ref, b1p_ref, scale_ref, shift_ref,
                         w2_ref, b2p_ref, out_ref):
    """Pass 2: layer-1 matmul -> folded BN + ReLU -> layer-2 matmuls -> 128*tanh.

    out_ref: (TM, 4*Cout), phase-major columns; out[token t, p*Cout + c] is
             output position 4*t + p of channel c (p = 2*tap1 + tap2).
    """
    cout = scale_ref.shape[1] // 2

    # Layer 1: one fused dot over the full (Cin, 2*Cout) packed weight.
    y = jnp.dot(x_ref[...], w1_ref[...],
                preferred_element_type=jnp.float32) + b1p_ref[...]
    # Folded BatchNorm (scale/shift precomputed in the wrapper) + ReLU.
    h = jnp.maximum(y * scale_ref[...] + shift_ref[...], 0.0)
    h = h.astype(jnp.bfloat16)

    # Layer 2: one full-width (Cout, 2*Cout) dot per layer-1 tap.
    w2 = w2_ref[...]
    b2p = b2p_ref[...]
    z0 = jnp.dot(h[:, :cout], w2, preferred_element_type=jnp.float32) + b2p  # phases 0,1
    z1 = jnp.dot(h[:, cout:], w2, preferred_element_type=jnp.float32) + b2p  # phases 2,3

    # Single lane-dense store of the whole tile.
    out_ref[...] = 128.0 * jnp.tanh(jnp.concatenate([z0, z1], axis=1))


def cnn_decoder_forward(x_ncl, params, *, tm=1024):
    """x_ncl: (N, Cin, L) f32 (PyTorch NCL layout). Returns (N, Cout, min(4L, 1000))."""
    w1, b1, gamma, beta, w2, b2 = params
    N, Cin, L = x_ncl.shape
    Cout = b1.shape[0]

    out_len = min(4 * L, 1000)      # final torch slice [:, :, 0:1000]
    L_keep = out_len // 4           # 1000 % 4 == 0 -> token groups are never split

    # --- plain-JAX glue: NCL -> token-major; pack the two deconv taps side by side.
    # TODO(synk): fold the phase un-interleave / NCL transpose into the kernel's out
    # BlockSpec (needs a strided lane scatter) to remove this extra HBM round-trip.
    x_tok = jnp.transpose(x_ncl, (0, 2, 1))                          # (N, L, Cin)
    x_stats = x_tok.reshape(N * L, Cin).astype(jnp.bfloat16)         # BN sees all tokens
    x_apply = x_tok[:, :L_keep, :].reshape(N * L_keep, Cin).astype(jnp.bfloat16)

    w1p = jnp.concatenate([w1[:, :, 0], w1[:, :, 1]], axis=1).astype(jnp.bfloat16)
    w2p = jnp.concatenate([w2[:, :, 0], w2[:, :, 1]], axis=1).astype(jnp.bfloat16)
    b1p = jnp.concatenate([b1, b1]).reshape(1, 2 * Cout).astype(jnp.float32)
    b2p = jnp.concatenate([b2, b2]).reshape(1, 2 * Cout).astype(jnp.float32)

    # ---------------- pass 1: BatchNorm batch statistics -----------------------
    M1 = N * L
    tm1 = min(tm, _round_up(M1, 8))
    M1p = _round_up(M1, tm1)
    if M1p != M1:
        x_stats = jnp.pad(x_stats, ((0, M1p - M1), (0, 0)))

    stats = pl.pallas_call(
        functools.partial(bn_stats_kernel, tm=tm1, m_valid=M1,
                          needs_mask=(M1p != M1)),
        out_shape=jax.ShapeDtypeStruct((2, 2 * Cout), jnp.float32),
        grid_spec=pltpu.PrefetchScalarGridSpec(
            num_scalar_prefetch=0,
            grid=(M1p // tm1,),
            in_specs=[pl.BlockSpec((tm1, Cin), lambda i: (i, 0)),
                      pl.BlockSpec((Cin, 2 * Cout), lambda i: (0, 0)),
                      pl.BlockSpec((1, 2 * Cout), lambda i: (0, 0))],
            out_specs=pl.BlockSpec((2, 2 * Cout), lambda i: (0, 0))),
        compiler_params=pltpu.CompilerParams(
            dimension_semantics=("arbitrary",),
            vmem_limit_bytes=_VMEM_LIMIT),
    )(x_stats, w1p, b1p)

    # Fold BN into a single per-channel scale/shift (tiny O(Cout) work in JAX).
    n_samples = jnp.float32(2 * M1)                    # 2 taps * N*L tokens per channel
    s_sum = stats[0, :Cout] + stats[0, Cout:]
    s_sq = stats[1, :Cout] + stats[1, Cout:]
    mean = s_sum / n_samples
    var = jnp.maximum(s_sq / n_samples - mean * mean, 0.0)   # clamp one-pass variance
    inv = jax.lax.rsqrt(var + BN_EPS)
    scale = inv * gamma
    shift = beta - mean * scale
    scale_p = jnp.concatenate([scale, scale]).reshape(1, 2 * Cout).astype(jnp.float32)
    shift_p = jnp.concatenate([shift, shift]).reshape(1, 2 * Cout).astype(jnp.float32)

    # ---------------- pass 2: normalize + ReLU + deconv2 + 128*tanh ------------
    M2 = N * L_keep
    tm2 = min(tm, _round_up(M2, 8))
    M2p = _round_up(M2, tm2)
    if M2p != M2:
        x_apply = jnp.pad(x_apply, ((0, M2p - M2), (0, 0)))

    out = pl.pallas_call(
        decoder_apply_kernel,
        out_shape=jax.ShapeDtypeStruct((M2p, 4 * Cout), jnp.float32),
        grid_spec=pltpu.PrefetchScalarGridSpec(
            num_scalar_prefetch=0,
            grid=(M2p // tm2,),
            in_specs=[pl.BlockSpec((tm2, Cin), lambda i: (i, 0)),
                      pl.BlockSpec((Cin, 2 * Cout), lambda i: (0, 0)),
                      pl.BlockSpec((1, 2 * Cout), lambda i: (0, 0)),
                      pl.BlockSpec((1, 2 * Cout), lambda i: (0, 0)),
                      pl.BlockSpec((1, 2 * Cout), lambda i: (0, 0)),
                      pl.BlockSpec((Cout, 2 * Cout), lambda i: (0, 0)),
                      pl.BlockSpec((1, 2 * Cout), lambda i: (0, 0))],
            out_specs=pl.BlockSpec((tm2, 4 * Cout), lambda i: (i, 0))),
        compiler_params=pltpu.CompilerParams(
            dimension_semantics=("parallel",),
            vmem_limit_bytes=_VMEM_LIMIT),
    )(x_apply, w1p, b1p, scale_p, shift_p, w2p, b2p)

    # Glue: un-interleave phases.  out[n*L_keep + t, p*Cout + c] -> y[n, c, 4t + p]
    y = (out[:M2]
         .reshape(N, L_keep, 4, Cout)
         .transpose(0, 3, 1, 2)
         .reshape(N, Cout, 4 * L_keep))
    return y


def ref_forward(x_ncl, params):
    """Pure-JAX reference with the PyTorch module's semantics (train-mode BN)."""
    w1, b1, gamma, beta, w2, b2 = params
    N, Cin, L = x_ncl.shape
    Cout = b1.shape[0]
    # deconv1: out[n, o, 2t+k] = sum_i x[n,i,t] * w1[i,o,k] + b1[o]
    y = jnp.einsum('nit,iok->notk', x_ncl, w1).reshape(N, Cout, 2 * L)
    y = y + b1[None, :, None]
    # BatchNorm1d, training mode (biased batch stats)
    mean = jnp.mean(y, axis=(0, 2), keepdims=True)
    var = jnp.mean((y - mean) ** 2, axis=(0, 2), keepdims=True)
    y = (y - mean) * jax.lax.rsqrt(var + BN_EPS)
    y = y * gamma[None, :, None] + beta[None, :, None]
    y = jnp.maximum(y, 0.0)
    # deconv2 + 128*tanh
    z = jnp.einsum('nit,iok->notk', y, w2).reshape(N, Cout, 4 * L)
    z = z + b2[None, :, None]
    z = 128.0 * jnp.tanh(z)
    return z[:, :, 0:1000]


def init_params(key, in_dim, out_dim):
    """Deterministic parameter init (shapes follow the PyTorch module)."""
    k1, k2, k3, k4 = jax.random.split(key, 4)
    bound1 = 1.0 / jnp.sqrt(in_dim * 2.0)
    bound2 = 1.0 / jnp.sqrt(out_dim * 2.0)
    # ConvTranspose1d weight shape: (in_channels, out_channels, kernel_size)
    w1 = jax.random.uniform(k1, (in_dim, out_dim, 2), jnp.float32, -bound1, bound1)
    b1 = jax.random.uniform(k2, (out_dim,), jnp.float32, -bound1, bound1)
    w2 = jax.random.uniform(k3, (out_dim, out_dim, 2), jnp.float32, -bound2, bound2)
    b2 = jax.random.uniform(k4, (out_dim,), jnp.float32, -bound2, bound2)
    gamma = jnp.ones((out_dim,), jnp.float32)   # fresh BatchNorm1d: weight=1
    beta = jnp.zeros((out_dim,), jnp.float32)   # fresh BatchNorm1d: bias=0
    return (w1, b1, gamma, beta, w2, b2)


if __name__ == "__main__":
    N, Cin, Cout, L = 2, 4, 8, 16     # small shapes; output length = 4*L = 64
    key = jax.random.PRNGKey(0)
    kx, kp = jax.random.split(key)
    x = jax.random.normal(kx, (N, Cin, L), jnp.float32)
    params = init_params(kp, Cin, Cout)

    out = jax.block_until_ready(cnn_decoder_forward(x, params))
    ref = ref_forward(x, params)

    assert out.shape == ref.shape == (N, Cout, min(4 * L, 1000)), out.shape
    # bf16 MXU operands (f32 accumulation) vs an f32 reference, amplified by the
    # 128*tanh output scale -> slightly looser tolerance than exact f32.
    assert jnp.allclose(out, ref, rtol=2e-2, atol=1.0), \
        float(jnp.max(jnp.abs(out - ref)))

    print("KERNEL_OK")
</pallas_src>

<mosaic_0001>
module attributes {stable_mosaic.version = 11 : i64} {
  func.func @bn_stats_kernel(%arg0: i32, %arg1: memref<32x4xbf16, #tpu.memory_space<vmem>>, %arg2: memref<4x16xbf16, #tpu.memory_space<vmem>>, %arg3: memref<1x16xf32, #tpu.memory_space<vmem>>, %arg4: memref<2x16xf32, #tpu.memory_space<vmem>>) attributes {dimension_semantics = [#tpu.dimension_semantics<arbitrary>], iteration_bounds = array<i64: 1>, scalar_prefetch = 0 : i64, scratch_operands = 0 : i64, tpu.core_type = #tpu.core_type<tc>, window_params = [{transform_indices = @transform_0, window_bounds = array<i64: 32, 4>}, {pipeline_mode = #tpu.pipeline_mode<synchronous>, transform_indices = @transform_1, window_bounds = array<i64: 4, 16>}, {pipeline_mode = #tpu.pipeline_mode<synchronous>, transform_indices = @transform_2, window_bounds = array<i64: 1, 16>}, {pipeline_mode = #tpu.pipeline_mode<synchronous>, transform_indices = @transform_3, window_bounds = array<i64: 2, 16>}]} {
    %c0_i32 = arith.constant 0 : i32
    %0 = arith.cmpi eq, %arg0, %c0_i32 : i32
    %1 = arith.extui %0 : i1 to i32
    %c0_i32_0 = arith.constant 0 : i32
    %2 = arith.cmpi ne, %1, %c0_i32_0 : i32
    scf.if %2 {
      %cst_12 = arith.constant 0.000000e+00 : f32
      %18 = vector.broadcast %cst_12 : f32 to vector<2x16xf32>
      %c0_13 = arith.constant 0 : index
      %c0_14 = arith.constant 0 : index
      %19 = vector.load %arg4[%c0_13, %c0_14] : memref<2x16xf32, #tpu.memory_space<vmem>>, vector<2x16xf32>
      tpu.vector_store %arg4[%c0_13, %c0_14], %18 {strides = array<i32>} : memref<2x16xf32, #tpu.memory_space<vmem>>, vector<2x16xf32>,
    } else {
    }
    %c0 = arith.constant 0 : index
    %c0_1 = arith.constant 0 : index
    %3 = vector.load %arg1[%c0, %c0_1] : memref<32x4xbf16, #tpu.memory_space<vmem>>, vector<32x4xbf16>
    %c0_2 = arith.constant 0 : index
    %c0_3 = arith.constant 0 : index
    %4 = vector.load %arg2[%c0_2, %c0_3] : memref<4x16xbf16, #tpu.memory_space<vmem>>, vector<4x16xbf16>
    %cst = arith.constant dense<0.000000e+00> : vector<32x16xf32>
    %5 = tpu.matmul %3, %4, %cst {dimension_numbers = #tpu.dot_dimension_numbers<[1], [0], [0], [1], [0, 0, 1, 1], [], []>} : vector<32x4xbf16>, vector<4x16xbf16>, vector<32x16xf32> -> vector<32x16xf32>
    %c0_4 = arith.constant 0 : index
    %c0_5 = arith.constant 0 : index
    %6 = vector.load %arg3[%c0_4, %c0_5] : memref<1x16xf32, #tpu.memory_space<vmem>>, vector<1x16xf32>
    %7 = vector.broadcast %6 : vector<1x16xf32> to vector<32x16xf32>
    %8 = arith.addf %5, %7 : vector<32x16xf32>
    %cst_6 = arith.constant dense<0.000000e+00> : vector<16xf32>
    %9 = vector.multi_reduction <add>, %8, %cst_6 [0] : vector<32x16xf32> to vector<16xf32>
    %10 = vector.shape_cast %9 : vector<16xf32> to vector<1x16xf32>
    %11 = arith.mulf %8, %8 : vector<32x16xf32>
    %cst_7 = arith.constant dense<0.000000e+00> : vector<16xf32>
    %12 = vector.multi_reduction <add>, %11, %cst_7 [0] : vector<32x16xf32> to vector<16xf32>
    %13 = vector.shape_cast %12 : vector<16xf32> to vector<1x16xf32>
    %c0_8 = arith.constant 0 : index
    %c0_9 = arith.constant 0 : index
    %14 = vector.load %arg4[%c0_8, %c0_9] : memref<2x16xf32, #tpu.memory_space<vmem>>, vector<2x16xf32>
    %15 = tpu.concatenate %10, %13 in 0 : vector<1x16xf32>, vector<1x16xf32> -> vector<2x16xf32>
    %16 = arith.addf %14, %15 : vector<2x16xf32>
    %c0_10 = arith.constant 0 : index
    %c0_11 = arith.constant 0 : index
    %17 = vector.load %arg4[%c0_10, %c0_11] : memref<2x16xf32, #tpu.memory_space<vmem>>, vector<2x16xf32>
    tpu.vector_store %arg4[%c0_10, %c0_11], %16 {strides = array<i32>} : memref<2x16xf32, #tpu.memory_space<vmem>>, vector<2x16xf32>,
    return
  }
  func.func @transform_0(%arg0: i32) -> (i32, i32) {
    %c0_i32 = arith.constant 0 : i32
    %c0_i32_0 = arith.constant 0 : i32
    return %arg0, %c0_i32 : i32, i32
  }
  func.func @transform_1(%arg0: i32) -> (i32, i32) {
    %c0_i32 = arith.constant 0 : i32
    %c0_i32_0 = arith.constant 0 : i32
    %c0_i32_1 = arith.constant 0 : i32
    return %c0_i32, %c0_i32_0 : i32, i32
  }
  func.func @transform_2(%arg0: i32) -> (i32, i32) {
    %c0_i32 = arith.constant 0 : i32
    %c0_i32_0 = arith.constant 0 : i32
    %c0_i32_1 = arith.constant 0 : i32
    return %c0_i32, %c0_i32_0 : i32, i32
  }
  func.func @transform_3(%arg0: i32) -> (i32, i32) {
    %c0_i32 = arith.constant 0 : i32
    %c0_i32_0 = arith.constant 0 : i32
    %c0_i32_1 = arith.constant 0 : i32
    return %c0_i32, %c0_i32_0 : i32, i32
  }
}

</mosaic_0001>

<llo_original>
// kernel: tpu_custom_call.1
$region0: #{tpu_custom_call.1}
  #allocation0 [shape = 'u32[]', space=smem, size = 0x4, offset = 0x4, fixed_abs, tag = 'smem constant byte address 0x4 - core index']
  #allocation1 [shape = 'u32[72,128]{1,0:T(1,128)}', space=vmem, size = 0x9000, scoped, tag = 'internal scratch']
  %s0 = inlined_call_operand.vmem [shape: bf16[32,4], index: 0, kind: input, shape index: {}]
  %s1 = inlined_call_operand.vmem [shape: bf16[4,16], index: 1, kind: input, shape index: {}]
  %s2 = inlined_call_operand.vmem [shape: f32[1,16], index: 2, kind: input, shape index: {}]
  %s3 = inlined_call_operand.hbm [shape: f32[2,16], index: 3, kind: output, shape index: {}]
  %s4 = sld [smem:[#allocation0]]
  $region26: #{tpu_custom_call.1} parent=0
    _
  %s6 = ssub.s32 1, %s4
  %s7 = scalar_select 0, %s6, %s4
  $region1: #{tpu_custom_call.1} parent=0
    #allocation2 [shape = 'u8[1024]{0}', space=vmem, size = 0x400, scoped, tag = 'output window, operand 0, single buffered']
    #allocation3 [shape = 's32[1]{0}', space=sflag, size = 0x4, scoped, tag = 'scoped memory for tpu_custom_call.1']
    %8 = vsyncpa [#allocation3], 0
    // Predicated region
    $region2: #{tpu_custom_call.1} parent=1 // pred_check
      _
    $region3: #{tpu_custom_call.1} parent=1 // pred_check_branch
      %10 = sbr.rel (0) target = $region5
    $region4: #{tpu_custom_call.1} parent=1 // pred_region
      _
    $region5: #{tpu_custom_call.1} parent=1 // pred_fallthru
      _
    // Predicated region
    $region6: #{tpu_custom_call.1} parent=1 // pred_check
      _
    $region7: #{tpu_custom_call.1} parent=1 // pred_check_branch
      %12 = sbr.rel (0) target = $region9
    $region8: #{tpu_custom_call.1} parent=1 // pred_region
      _
    $region9: #{tpu_custom_call.1} parent=1 // pred_fallthru
      _
    // Predicated region
    $region10: #{tpu_custom_call.1} parent=1 // pred_check
      _
    $region11: #{tpu_custom_call.1} parent=1 // pred_check_branch
      %14 = sbr.rel (0) target = $region13
    $region12: #{tpu_custom_call.1} parent=1 // pred_region
      _
    $region13: #{tpu_custom_call.1} parent=1 // pred_fallthru
      _
    %p16 = scmp.eq.s32.totalorder 0, 0
    // Predicated region
    $region14: #{tpu_custom_call.1} parent=1 // pred_check
      %p17 = pneg %p16
    $region15: #{tpu_custom_call.1} parent=1 // pred_check_branch
      %19 = sbr.rel (%p17) target = $region17
    $region16: #{tpu_custom_call.1} parent=1 // pred_region
      %vm20 = vcmask 123904
      %21 = vst.msk [vmem:[#allocation2] sm:$0x3] %vm20, 0.0
    $region17: #{tpu_custom_call.1} parent=1 // pred_fallthru
      _
    %v22 = vld [vmem:[%s0] sm:$0xf]
    %v23 = vld [vmem:[%s0 + $0x4] sm:$0xf]
    %v24 = vld [vmem:[%s0 + $0x8] sm:$0xf]
    %v25 = vld [vmem:[%s0 + $0xc] sm:$0xf]
    %v26 = vld [vmem:[%s1] sm:$0x3]
    %v27 = vld [vmem:[%s2] sm:$0x1]
    %v29 = vperm.slane %v27, 0
    %v35 = vunpack.c.l.b16 %v22
    %v36 = vunpack.c.l.b16 %v23
    %v37 = vunpack.c.l.b16 %v24
    %v38 = vunpack.c.l.b16 %v25
    %v39 = vpack.c.b16 %v36, %v35
    %v40 = vpack.c.b16 %v38, %v37
    %vm41 = vcmask 31744
    %v43 = vsel %vm41, %v39, 0
    %v46 = vsel %vm41, %v40, 0
    %vm48 = vcmask 1041408
    %v50 = vsel %vm48, %v26, 0
    %52 = vmatpush.bf16.msra.mxu0 0
    %53 = vmatpush.bf16.msra.mxu0 0
    %54 = vmatpush.bf16.msra.mxu0 0
    %55 = vmatpush.bf16.msra.mxu0 0
    %56 = vmatpush.bf16.msra.mxu0 0
    %57 = vmatpush.bf16.msra.mxu0 0
    %58 = vmatpush.bf16.msra.mxu0 0
    %59 = vmatpush.bf16.msra.mxu0 %v50
    %60 = vmatmul.bf16.gmra.mxu0 %v43
    %v61 = vpop.f32.mrf.mxu0
    %v62 = vadd.f32 %v29, %v61
    %v63 = vpop.f32.mrf.mxu0
    %v64 = vadd.f32 %v29, %v63
    %65 = vmatmul.bf16.gmra.mxu0 %v46
    %v66 = vpop.f32.mrf.mxu0
    %v67 = vadd.f32 %v29, %v66
    %v68 = vpop.f32.mrf.mxu0
    %v69 = vadd.f32 %v29, %v68
    %70 = vdwg.mxu0
    %vm71 = vcmask 130048
    %v72 = vsel %vm71, %v62, 0.0
    %v73 = vsel %vm71, %v64, 0.0
    %v74 = vadd.f32 %v72, %v73
    %v75 = vsel %vm71, %v67, 0.0
    %v76 = vadd.f32 %v74, %v75
    %v77 = vsel %vm71, %v69, 0.0
    %v78 = vadd.f32 %v76, %v77
    %v79 = vrot.slane %v78, 4
    %v80 = vadd.f32 %v78, %v79
    %v81 = vrot.slane %v80, 2
    %v82 = vadd.f32 %v80, %v81
    %v83 = vrot.slane %v82, 1
    %v84 = vadd.f32 %v82, %v83
    %v85 = vmul.f32 %v62, %v62
    %v86 = vmul.f32 %v64, %v64
    %v87 = vmul.f32 %v67, %v67
    %v88 = vmul.f32 %v69, %v69
    %v89 = vsel %vm71, %v85, 0.0
    %v90 = vsel %vm71, %v86, 0.0
    %v91 = vadd.f32 %v89, %v90
    %v92 = vsel %vm71, %v87, 0.0
    %v93 = vadd.f32 %v91, %v92
    %v94 = vsel %vm71, %v88, 0.0
    %v95 = vadd.f32 %v93, %v94
    %v96 = vrot.slane %v95, 4
    %v97 = vadd.f32 %v95, %v96
    %v98 = vrot.slane %v97, 2
    %v99 = vadd.f32 %v97, %v98
    %v100 = vrot.slane %v99, 1
    %v101 = vadd.f32 %v99, %v100
    %v102 = vld [vmem:[#allocation2] sm:$0x3]
    %vm103 = vcmask 1040384
    %v104 = vsel %vm103, %v84, %v101
    %v105 = vadd.f32 %v102, %v104
    %vm106 = vcmask 123904
    %107 = vst.msk [vmem:[#allocation2] sm:$0x3] %vm106, %v105
    // Predicated region
    $region18: #{tpu_custom_call.1} parent=1 // pred_check
      _
    $region19: #{tpu_custom_call.1} parent=1 // pred_check_branch
      %109 = sbr.rel (0) target = $region21
    $region20: #{tpu_custom_call.1} parent=1 // pred_region
      %111 = vsyncadd [#allocation3], 0
      %s113 = sshll.u32 [#allocation2], 4
      %s114 = int_to_ptr.vmem [resolvable:$true] %s113
      %s115 = sshll.u32 %s3, 4
      %s116 = int_to_ptr.hbm [resolvable:$true] %s115
      %118 = dma.vmem_to_hbm [thread:$0]  %s114, 32, %s116, [#allocation3]
    $region21: #{tpu_custom_call.1} parent=1 // pred_fallthru
      _
    // Predicated region
    $region22: #{tpu_custom_call.1} parent=1 // pred_check
      _
    $region23: #{tpu_custom_call.1} parent=1 // pred_check_branch
      %120 = sbr.rel (0) target = $region25
    $region24: #{tpu_custom_call.1} parent=1 // pred_region
      %122 = dma.done [#allocation3], 32
    $region25: #{tpu_custom_call.1} parent=1 // pred_fallthru
      _
    %123 = vsyncpa [#allocation3], 1

</llo_original>
